<compile_context>
chip_gen: v6e
topology: v6e:2x2x1
jax: 0.10.0
libtpu: 0.0.40
codegen_flags: <defaults>
</compile_context>

<pallas_src>
import functools

import jax
import jax.numpy as jnp
from jax.experimental import pallas as pl
from jax.experimental.pallas import tpu as pltpu

NUM_CLASSES = 10       # 'cifar' branch of the reference module
MAGNITUDE = 0.001      # default noise magnitude in mahalanobis_score


def _round_up(v, m):
    return (v + m - 1) // m * m


def _fused_kernel(*refs, num_layers, channels, magnitude):
    """Entire MahalanobisDetector.forward for one batch tile."""
    x_ref, inv_std_ref, reg_w_ref, reg_b_ref = refs[:4]
    layer_refs = refs[4:4 + 4 * num_layers]
    out_ref = refs[4 + 4 * num_layers]

    C = channels
    hw = x_ref.shape[1] // C
    tb = x_ref.shape[0]

    inv_std = inv_std_ref[...]                  # (1, C)   precomputed 1/std
    reg_w = reg_w_ref[...]                      # (1, L)   regressor weight
    reg_b = reg_b_ref[...]                      # (1, 1)   regressor bias

    x = x_ref[...]                              # (TB, C*HW), native dtype
    # Global average pool per channel over the spatial lanes; f32 accumulation.
    # x is read from HBM exactly once; result kept as C per-channel (TB, 1) columns
    # so no sublane<->lane reshape/transpose is ever needed.
    xcols = [jnp.mean(x[:, c * hw:(c + 1) * hw], axis=1, keepdims=True,
                      dtype=jnp.float32) for c in range(C)]

    logits = jnp.zeros((tb, 1), jnp.float32) + reg_b

    def vpu_mm(cols, m):
        # (TB, K) @ (K, N) with K small & static, as K VPU broadcast multiply-adds.
        acc = cols[0] * m[0:1, :]
        for i in range(1, len(cols)):
            acc = acc + cols[i] * m[i:i + 1, :]
        return acc

    for l in range(num_layers):
        # Per-layer class-/precision-static products, precomputed host-side:
        #   M1    = W^T (P+P^T) W        (C, C)
        #   M2    = W^T (P+P^T) mu^T     (C, NC)
        #   t3    = 0.5*diag(mu (P+P^T) mu^T)   (1, NC)
        #   muPsW = mu (P+P^T) W         (NC, C)
        M1, M2, t3, muPsW = (r[...] for r in layer_refs[4 * l:4 * l + 4])
        nc = t3.shape[1]

        def gauss(cols):
            # g[b,c] = -0.5 * (f_b - mu_c) P (f_b - mu_c)^T with f = xbar @ W^T,
            # fully folded into C-space.
            xm1 = vpu_mm(cols, M1)                                   # (TB, C)
            t1 = xm1[:, 0:1] * cols[0]
            for c in range(1, C):
                t1 = t1 + xm1[:, c:c + 1] * cols[c]                  # (TB, 1)
            t2 = vpu_mm(cols, M2)                                    # (TB, NC)
            return -0.5 * (0.5 * t1 - t2 + t3), xm1                  # (TB, NC)

        # ---- pass 1: clean features -> predicted class per sample ----
        g, xm1 = gauss(xcols)
        gmax = jnp.max(g, axis=1, keepdims=True)
        ids = jax.lax.broadcasted_iota(jnp.int32, g.shape, 1)
        pick = jnp.min(jnp.where(g >= gmax, ids, nc), axis=1, keepdims=True)  # first argmax
        onehot = (ids == pick).astype(jnp.float32)                            # (TB, NC)

        # ---- analytical input-gradient sign through the linear backbone ----
        # TODO(synk): torch.autograd.grad through an arbitrary backbone has no
        # Pallas equivalent; the synthetic backbone (1x1 conv + GAP) is linear,
        # so its exact input gradient is computed analytically. Only the sign
        # matters, so the positive 0.5/(B*HW) scale factors are dropped.
        mu_pick = jnp.dot(onehot, muPsW, preferred_element_type=jnp.float32)  # (TB, C)
        gxbar = xm1 - mu_pick                                                  # (TB, C)
        sgn = jnp.where(gxbar >= 0.0, 1.0, -1.0).astype(jnp.float32)          # grad.ge(0)*2 - 1

        # ---- pass 2: perturbation folded into pooled-feature space ----
        # mean_hw(x - magnitude * sgn / std) == xbar - magnitude * sgn * inv_std
        pert_cols = [xcols[c] - magnitude * sgn[:, c:c + 1] * inv_std[:, c:c + 1]
                     for c in range(C)]
        g2, _ = gauss(pert_cols)
        score = jnp.max(g2, axis=1, keepdims=True)                             # (TB, 1)

        # Fused regressor: accumulate W[:, l] * score_l (== feats @ W^T).
        logits = logits + score * reg_w[:, l:l + 1]

    out_ref[...] = jax.nn.sigmoid(logits)                                      # (TB, 1)


def _full_spec(arr):
    """BlockSpec keeping a (small) parameter array whole and grid-invariant."""
    nd = arr.ndim
    return pl.BlockSpec(arr.shape, lambda i, nd=nd: (0,) * nd)


def _pick_batch_tile(batch, row_bytes, budget_bytes=16 << 20):
    """x rows per grid step: double-buffered, VMEM-budgeted (padded footprint)."""
    fit = int(budget_bytes // max(1, 2 * row_bytes))   # rows under the x budget
    fit = max(8, (fit // 8) * 8)
    tb = min(batch, fit)
    # Keep >=2 grid steps whenever the batch allows it (megacore sharding on v7x;
    # costs nothing on single-TC v5e/v6e).
    if batch >= 16:
        half = max(8, (((batch + 1) // 2) // 8) * 8)
        tb = min(tb, half)
    if tb < batch:
        tb = max(8, (tb // 8) * 8)                     # sublane-aligned partial tiles
    return tb


def mahalanobis_detector_forward(x_nchw, params, magnitude=MAGNITUDE):
    """Equivalent of MahalanobisDetector.forward: returns proba of shape (B,)."""
    B, C, H, W = x_nchw.shape
    HW = H * W
    CHW = C * HW
    # Free, contiguous reshape; keep native dtype (no HBM copy).  The kernel
    # accumulates the GAP in f32.
    x = x_nchw.reshape(B, CHW)
    inv_std = (1.0 / params["dataset_std"].astype(jnp.float32)).reshape(1, C)

    # Class-/precision-static precompute, folded into C-space (done once host-side).
    layer_args = []
    for w, mu, P in zip(params["layer_w"], params["sample_mean"], params["precision"]):
        w = w.astype(jnp.float32)                                # (D, C)
        mu = mu.astype(jnp.float32)                              # (NC, D)
        P = P.astype(jnp.float32)                                # (D, D)
        Psym = P + P.T
        PsW = Psym @ w                                           # (D, C)
        M1 = w.T @ PsW                                           # (C, C)
        M2 = w.T @ (Psym @ mu.T)                                 # (C, NC)
        t3 = 0.5 * jnp.sum((mu @ Psym) * mu, axis=1)[None, :]    # (1, NC)
        muPsW = mu @ PsW                                         # (NC, C)
        layer_args += [M1, M2, t3, muPsW]

    num_layers = len(params["layer_w"])
    itemsize = jnp.dtype(x.dtype).itemsize
    row_bytes = _round_up(CHW, 128) * itemsize                   # padded bytes per x row
    tb = _pick_batch_tile(B, row_bytes)
    grid = (pl.cdiv(B, tb),)

    args = [x, inv_std,
            params["reg_w"].astype(jnp.float32),
            params["reg_b"].astype(jnp.float32)] + layer_args

    in_specs = [pl.BlockSpec((tb, CHW), lambda i: (i, 0))] \
        + [_full_spec(a) for a in args[1:]]

    # Explicit scoped-VMEM limit: padded double-buffered x tile + params + output,
    # clamped to every generation's physical VMEM (v7x has only 64 MiB per TC).
    x_bytes = 2 * _round_up(tb, 8) * _round_up(CHW, 128) * itemsize
    param_bytes = 0
    for a in args[1:]:
        param_bytes += 2 * _round_up(a.shape[0], 8) * _round_up(a.shape[1], 128) * 4
    out_bytes = 2 * _round_up(tb, 8) * 128 * 4
    vmem_limit = max(x_bytes + param_bytes + out_bytes + (2 << 20), 16 << 20)
    vmem_limit = min(vmem_limit, 60 << 20)

    out = pl.pallas_call(
        functools.partial(_fused_kernel, num_layers=num_layers, channels=C,
                          magnitude=magnitude),
        out_shape=jax.ShapeDtypeStruct((B, 1), jnp.float32),
        grid=grid,
        in_specs=in_specs,
        out_specs=pl.BlockSpec((tb, 1), lambda i: (i, 0)),
        compiler_params=pltpu.CompilerParams(
            dimension_semantics=("parallel",),
            vmem_limit_bytes=int(vmem_limit)),
    )(*args)
    return out[:, 0]                                             # torch .squeeze(1)


def make_params(key, in_channels, layer_dims, num_classes):
    """Deterministic synthetic parameters (backbone, fitted stats, regressor)."""
    keys = jax.random.split(key, 3 * len(layer_dims) + 2)
    layer_w, sample_mean, precision = [], [], []
    for i, d in enumerate(layer_dims):
        kw, km, kp = keys[3 * i], keys[3 * i + 1], keys[3 * i + 2]
        layer_w.append(jax.random.normal(kw, (d, in_channels), jnp.float32))
        sample_mean.append(0.1 * jax.random.normal(km, (num_classes, d), jnp.float32))
        a = 0.3 * jax.random.normal(kp, (d, d), jnp.float32)
        precision.append(a @ a.T / d + 0.5 * jnp.eye(d, dtype=jnp.float32))  # symmetric PSD
    reg_w = 0.1 * jax.random.normal(keys[-2], (1, len(layer_dims)), jnp.float32)
    reg_b = jnp.zeros((1, 1), jnp.float32)
    return {
        "layer_w": layer_w,
        "sample_mean": sample_mean,
        "precision": precision,
        "reg_w": reg_w,
        "reg_b": reg_b,
        "dataset_std": jnp.array([0.2470, 0.2435, 0.2616], jnp.float32),     # CIFAR std
    }


if __name__ == "__main__":
    key = jax.random.PRNGKey(0)
    kx, kp = jax.random.split(key)

    B, C, H, W = 2, 3, 16, 16
    layer_dims = [16, 32]                                                    # two synthetic feature layers

    x = jax.random.normal(kx, (B, C, H, W), jnp.float32)                     # NCHW, like the torch module
    params = make_params(kp, C, layer_dims, NUM_CLASSES)

    proba = mahalanobis_detector_forward(x, params)
    proba = jax.block_until_ready(proba)

    assert proba.shape == (B,), proba.shape
    assert bool(jnp.all(jnp.isfinite(proba)))
    assert bool(jnp.all((proba >= 0.0) & (proba <= 1.0)))
    print("KERNEL_OK")
</pallas_src>

<mosaic_0001>
module attributes {stable_mosaic.version = 11 : i64} {
  func.func @_fused_kernel(%arg0: i32, %arg1: memref<2x768xf32, #tpu.memory_space<vmem>>, %arg2: memref<1x3xf32, #tpu.memory_space<vmem>>, %arg3: memref<1x2xf32, #tpu.memory_space<vmem>>, %arg4: memref<1x1xf32, #tpu.memory_space<vmem>>, %arg5: memref<3x3xf32, #tpu.memory_space<vmem>>, %arg6: memref<3x10xf32, #tpu.memory_space<vmem>>, %arg7: memref<1x10xf32, #tpu.memory_space<vmem>>, %arg8: memref<10x3xf32, #tpu.memory_space<vmem>>, %arg9: memref<3x3xf32, #tpu.memory_space<vmem>>, %arg10: memref<3x10xf32, #tpu.memory_space<vmem>>, %arg11: memref<1x10xf32, #tpu.memory_space<vmem>>, %arg12: memref<10x3xf32, #tpu.memory_space<vmem>>, %arg13: memref<2x1xf32, #tpu.memory_space<vmem>>) attributes {dimension_semantics = [#tpu.dimension_semantics<parallel>], iteration_bounds = array<i64: 1>, scalar_prefetch = 0 : i64, scratch_operands = 0 : i64, tpu.core_type = #tpu.core_type<tc>, window_params = [{transform_indices = @transform_0, window_bounds = array<i64: 2, 768>}, {pipeline_mode = #tpu.pipeline_mode<synchronous>, transform_indices = @transform_1, window_bounds = array<i64: 1, 3>}, {pipeline_mode = #tpu.pipeline_mode<synchronous>, transform_indices = @transform_2, window_bounds = array<i64: 1, 2>}, {pipeline_mode = #tpu.pipeline_mode<synchronous>, transform_indices = @transform_3, window_bounds = array<i64: 1, 1>}, {pipeline_mode = #tpu.pipeline_mode<synchronous>, transform_indices = @transform_4, window_bounds = array<i64: 3, 3>}, {pipeline_mode = #tpu.pipeline_mode<synchronous>, transform_indices = @transform_5, window_bounds = array<i64: 3, 10>}, {pipeline_mode = #tpu.pipeline_mode<synchronous>, transform_indices = @transform_6, window_bounds = array<i64: 1, 10>}, {pipeline_mode = #tpu.pipeline_mode<synchronous>, transform_indices = @transform_7, window_bounds = array<i64: 10, 3>}, {pipeline_mode = #tpu.pipeline_mode<synchronous>, transform_indices = @transform_8, window_bounds = array<i64: 3, 3>}, {pipeline_mode = #tpu.pipeline_mode<synchronous>, transform_indices = @transform_9, window_bounds = array<i64: 3, 10>}, {pipeline_mode = #tpu.pipeline_mode<synchronous>, transform_indices = @transform_10, window_bounds = array<i64: 1, 10>}, {pipeline_mode = #tpu.pipeline_mode<synchronous>, transform_indices = @transform_11, window_bounds = array<i64: 10, 3>}, {transform_indices = @transform_12, window_bounds = array<i64: 2, 1>}]} {
    %c0 = arith.constant 0 : index
    %c0_0 = arith.constant 0 : index
    %0 = vector.load %arg2[%c0, %c0_0] : memref<1x3xf32, #tpu.memory_space<vmem>>, vector<1x3xf32>
    %c0_1 = arith.constant 0 : index
    %c0_2 = arith.constant 0 : index
    %1 = vector.load %arg3[%c0_1, %c0_2] : memref<1x2xf32, #tpu.memory_space<vmem>>, vector<1x2xf32>
    %c0_3 = arith.constant 0 : index
    %c0_4 = arith.constant 0 : index
    %2 = vector.load %arg4[%c0_3, %c0_4] : memref<1x1xf32, #tpu.memory_space<vmem>>, vector<1x1xf32>
    %c0_5 = arith.constant 0 : index
    %c0_6 = arith.constant 0 : index
    %3 = vector.load %arg1[%c0_5, %c0_6] : memref<2x768xf32, #tpu.memory_space<vmem>>, vector<2x768xf32>
    %4 = vector.extract_strided_slice %3 {offsets = [0, 0], sizes = [2, 256], strides = [1, 1]} : vector<2x768xf32> to vector<2x256xf32>
    %cst = arith.constant dense<0.000000e+00> : vector<2xf32>
    %5 = vector.multi_reduction <add>, %4, %cst [1] : vector<2x256xf32> to vector<2xf32>
    %6 = vector.shape_cast %5 : vector<2xf32> to vector<2x1xf32>
    %cst_7 = arith.constant 2.560000e+02 : f32
    %7 = vector.broadcast %cst_7 : f32 to vector<2x1xf32>
    %8 = arith.divf %6, %7 : vector<2x1xf32>
    %9 = vector.extract_strided_slice %3 {offsets = [0, 256], sizes = [2, 256], strides = [1, 1]} : vector<2x768xf32> to vector<2x256xf32>
    %cst_8 = arith.constant dense<0.000000e+00> : vector<2xf32>
    %10 = vector.multi_reduction <add>, %9, %cst_8 [1] : vector<2x256xf32> to vector<2xf32>
    %11 = vector.shape_cast %10 : vector<2xf32> to vector<2x1xf32>
    %cst_9 = arith.constant 2.560000e+02 : f32
    %12 = vector.broadcast %cst_9 : f32 to vector<2x1xf32>
    %13 = arith.divf %11, %12 : vector<2x1xf32>
    %14 = vector.extract_strided_slice %3 {offsets = [0, 512], sizes = [2, 256], strides = [1, 1]} : vector<2x768xf32> to vector<2x256xf32>
    %cst_10 = arith.constant dense<0.000000e+00> : vector<2xf32>
    %15 = vector.multi_reduction <add>, %14, %cst_10 [1] : vector<2x256xf32> to vector<2xf32>
    %16 = vector.shape_cast %15 : vector<2xf32> to vector<2x1xf32>
    %cst_11 = arith.constant 2.560000e+02 : f32
    %17 = vector.broadcast %cst_11 : f32 to vector<2x1xf32>
    %18 = arith.divf %16, %17 : vector<2x1xf32>
    %cst_12 = arith.constant 0.000000e+00 : f32
    %19 = vector.broadcast %cst_12 : f32 to vector<2x1xf32>
    %20 = vector.broadcast %2 : vector<1x1xf32> to vector<2x1xf32>
    %21 = arith.addf %19, %20 : vector<2x1xf32>
    %c0_13 = arith.constant 0 : index
    %c0_14 = arith.constant 0 : index
    %22 = vector.load %arg5[%c0_13, %c0_14] : memref<3x3xf32, #tpu.memory_space<vmem>>, vector<3x3xf32>
    %c0_15 = arith.constant 0 : index
    %c0_16 = arith.constant 0 : index
    %23 = vector.load %arg6[%c0_15, %c0_16] : memref<3x10xf32, #tpu.memory_space<vmem>>, vector<3x10xf32>
    %c0_17 = arith.constant 0 : index
    %c0_18 = arith.constant 0 : index
    %24 = vector.load %arg7[%c0_17, %c0_18] : memref<1x10xf32, #tpu.memory_space<vmem>>, vector<1x10xf32>
    %c0_19 = arith.constant 0 : index
    %c0_20 = arith.constant 0 : index
    %25 = vector.load %arg8[%c0_19, %c0_20] : memref<10x3xf32, #tpu.memory_space<vmem>>, vector<10x3xf32>
    %26 = vector.extract_strided_slice %22 {offsets = [0, 0], sizes = [1, 3], strides = [1, 1]} : vector<3x3xf32> to vector<1x3xf32>
    %27 = vector.broadcast %8 : vector<2x1xf32> to vector<2x3xf32>
    %28 = vector.broadcast %26 : vector<1x3xf32> to vector<2x3xf32>
    %29 = arith.mulf %27, %28 : vector<2x3xf32>
    %30 = vector.extract_strided_slice %22 {offsets = [1, 0], sizes = [1, 3], strides = [1, 1]} : vector<3x3xf32> to vector<1x3xf32>
    %31 = vector.broadcast %13 : vector<2x1xf32> to vector<2x3xf32>
    %32 = vector.broadcast %30 : vector<1x3xf32> to vector<2x3xf32>
    %33 = arith.mulf %31, %32 : vector<2x3xf32>
    %34 = arith.addf %29, %33 : vector<2x3xf32>
    %35 = vector.extract_strided_slice %22 {offsets = [2, 0], sizes = [1, 3], strides = [1, 1]} : vector<3x3xf32> to vector<1x3xf32>
    %36 = vector.broadcast %18 : vector<2x1xf32> to vector<2x3xf32>
    %37 = vector.broadcast %35 : vector<1x3xf32> to vector<2x3xf32>
    %38 = arith.mulf %36, %37 : vector<2x3xf32>
    %39 = arith.addf %34, %38 : vector<2x3xf32>
    %40 = vector.extract_strided_slice %39 {offsets = [0, 0], sizes = [2, 1], strides = [1, 1]} : vector<2x3xf32> to vector<2x1xf32>
    %41 = arith.mulf %40, %8 : vector<2x1xf32>
    %42 = vector.extract_strided_slice %39 {offsets = [0, 1], sizes = [2, 1], strides = [1, 1]} : vector<2x3xf32> to vector<2x1xf32>
    %43 = arith.mulf %42, %13 : vector<2x1xf32>
    %44 = arith.addf %41, %43 : vector<2x1xf32>
    %45 = vector.extract_strided_slice %39 {offsets = [0, 2], sizes = [2, 1], strides = [1, 1]} : vector<2x3xf32> to vector<2x1xf32>
    %46 = arith.mulf %45, %18 : vector<2x1xf32>
    %47 = arith.addf %44, %46 : vector<2x1xf32>
    %48 = vector.extract_strided_slice %23 {offsets = [0, 0], sizes = [1, 10], strides = [1, 1]} : vector<3x10xf32> to vector<1x10xf32>
    %49 = vector.broadcast %8 : vector<2x1xf32> to vector<2x10xf32>
    %50 = vector.broadcast %48 : vector<1x10xf32> to vector<2x10xf32>
    %51 = arith.mulf %49, %50 : vector<2x10xf32>
    %52 = vector.extract_strided_slice %23 {offsets = [1, 0], sizes = [1, 10], strides = [1, 1]} : vector<3x10xf32> to vector<1x10xf32>
    %53 = vector.broadcast %13 : vector<2x1xf32> to vector<2x10xf32>
    %54 = vector.broadcast %52 : vector<1x10xf32> to vector<2x10xf32>
    %55 = arith.mulf %53, %54 : vector<2x10xf32>
    %56 = arith.addf %51, %55 : vector<2x10xf32>
    %57 = vector.extract_strided_slice %23 {offsets = [2, 0], sizes = [1, 10], strides = [1, 1]} : vector<3x10xf32> to vector<1x10xf32>
    %58 = vector.broadcast %18 : vector<2x1xf32> to vector<2x10xf32>
    %59 = vector.broadcast %57 : vector<1x10xf32> to vector<2x10xf32>
    %60 = arith.mulf %58, %59 : vector<2x10xf32>
    %61 = arith.addf %56, %60 : vector<2x10xf32>
    %cst_21 = arith.constant 5.000000e-01 : f32
    %62 = vector.broadcast %cst_21 : f32 to vector<2x1xf32>
    %63 = arith.mulf %62, %47 : vector<2x1xf32>
    %64 = vector.broadcast %63 : vector<2x1xf32> to vector<2x10xf32>
    %65 = arith.subf %64, %61 : vector<2x10xf32>
    %66 = vector.broadcast %24 : vector<1x10xf32> to vector<2x10xf32>
    %67 = arith.addf %65, %66 : vector<2x10xf32>
    %cst_22 = arith.constant -5.000000e-01 : f32
    %68 = vector.broadcast %cst_22 : f32 to vector<2x10xf32>
    %69 = arith.mulf %68, %67 : vector<2x10xf32>
    %cst_23 = arith.constant dense<0xFF800000> : vector<2xf32>
    %70 = vector.multi_reduction <maximumf>, %69, %cst_23 [1] : vector<2x10xf32> to vector<2xf32>
    %71 = vector.shape_cast %70 : vector<2xf32> to vector<2x1xf32>
    %72 = tpu.iota {dimensions = array<i32: 1>} : vector<2x10xi32>
    %73 = vector.broadcast %71 : vector<2x1xf32> to vector<2x10xf32>
    %74 = arith.cmpf oge, %69, %73 : vector<2x10xf32>
    %c10_i32 = arith.constant 10 : i32
    %75 = vector.broadcast %c10_i32 : i32 to vector<2x10xi32>
    %76 = arith.select %74, %72, %75 : vector<2x10xi1>, vector<2x10xi32>
    %cst_24 = arith.constant dense<2147483647> : vector<2xi32>
    %77 = vector.multi_reduction <minsi>, %76, %cst_24 [1] : vector<2x10xi32> to vector<2xi32>
    %78 = vector.shape_cast %77 : vector<2xi32> to vector<2x1xi32>
    %79 = vector.broadcast %78 : vector<2x1xi32> to vector<2x10xi32>
    %80 = arith.cmpi eq, %72, %79 : vector<2x10xi32>
    %81 = arith.extui %80 : vector<2x10xi1> to vector<2x10xi32>
    %82 = arith.sitofp %81 : vector<2x10xi32> to vector<2x10xf32>
    %cst_25 = arith.constant dense<0.000000e+00> : vector<2x3xf32>
    %83 = tpu.matmul %82, %25, %cst_25 {dimension_numbers = #tpu.dot_dimension_numbers<[1], [0], [0], [1], [0, 0, 1, 1], [], []>} : vector<2x10xf32>, vector<10x3xf32>, vector<2x3xf32> -> vector<2x3xf32>
    %84 = arith.subf %39, %83 : vector<2x3xf32>
    %cst_26 = arith.constant 0.000000e+00 : f32
    %85 = vector.broadcast %cst_26 : f32 to vector<2x3xf32>
    %86 = arith.cmpf oge, %84, %85 : vector<2x3xf32>
    %cst_27 = arith.constant 1.000000e+00 : f32
    %cst_28 = arith.constant -1.000000e+00 : f32
    %87 = vector.broadcast %cst_27 : f32 to vector<2x3xf32>
    %88 = vector.broadcast %cst_28 : f32 to vector<2x3xf32>
    %89 = arith.select %86, %87, %88 : vector<2x3xi1>, vector<2x3xf32>
    %90 = vector.extract_strided_slice %89 {offsets = [0, 0], sizes = [2, 1], strides = [1, 1]} : vector<2x3xf32> to vector<2x1xf32>
    %cst_29 = arith.constant 1.000000e-03 : f32
    %91 = vector.broadcast %cst_29 : f32 to vector<2x1xf32>
    %92 = arith.mulf %91, %90 : vector<2x1xf32>
    %93 = vector.extract_strided_slice %0 {offsets = [0, 0], sizes = [1, 1], strides = [1, 1]} : vector<1x3xf32> to vector<1x1xf32>
    %94 = vector.broadcast %93 : vector<1x1xf32> to vector<2x1xf32>
    %95 = arith.mulf %92, %94 : vector<2x1xf32>
    %96 = arith.subf %8, %95 : vector<2x1xf32>
    %97 = vector.extract_strided_slice %89 {offsets = [0, 1], sizes = [2, 1], strides = [1, 1]} : vector<2x3xf32> to vector<2x1xf32>
    %cst_30 = arith.constant 1.000000e-03 : f32
    %98 = vector.broadcast %cst_30 : f32 to vector<2x1xf32>
    %99 = arith.mulf %98, %97 : vector<2x1xf32>
    %100 = vector.extract_strided_slice %0 {offsets = [0, 1], sizes = [1, 1], strides = [1, 1]} : vector<1x3xf32> to vector<1x1xf32>
    %101 = vector.broadcast %100 : vector<1x1xf32> to vector<2x1xf32>
    %102 = arith.mulf %99, %101 : vector<2x1xf32>
    %103 = arith.subf %13, %102 : vector<2x1xf32>
    %104 = vector.extract_strided_slice %89 {offsets = [0, 2], sizes = [2, 1], strides = [1, 1]} : vector<2x3xf32> to vector<2x1xf32>
    %cst_31 = arith.constant 1.000000e-03 : f32
    %105 = vector.broadcast %cst_31 : f32 to vector<2x1xf32>
    %106 = arith.mulf %105, %104 : vector<2x1xf32>
    %107 = vector.extract_strided_slice %0 {offsets = [0, 2], sizes = [1, 1], strides = [1, 1]} : vector<1x3xf32> to vector<1x1xf32>
    %108 = vector.broadcast %107 : vector<1x1xf32> to vector<2x1xf32>
    %109 = arith.mulf %106, %108 : vector<2x1xf32>
    %110 = arith.subf %18, %109 : vector<2x1xf32>
    %111 = vector.extract_strided_slice %22 {offsets = [0, 0], sizes = [1, 3], strides = [1, 1]} : vector<3x3xf32> to vector<1x3xf32>
    %112 = vector.broadcast %96 : vector<2x1xf32> to vector<2x3xf32>
    %113 = vector.broadcast %111 : vector<1x3xf32> to vector<2x3xf32>
    %114 = arith.mulf %112, %113 : vector<2x3xf32>
    %115 = vector.extract_strided_slice %22 {offsets = [1, 0], sizes = [1, 3], strides = [1, 1]} : vector<3x3xf32> to vector<1x3xf32>
    %116 = vector.broadcast %103 : vector<2x1xf32> to vector<2x3xf32>
    %117 = vector.broadcast %115 : vector<1x3xf32> to vector<2x3xf32>
    %118 = arith.mulf %116, %117 : vector<2x3xf32>
    %119 = arith.addf %114, %118 : vector<2x3xf32>
    %120 = vector.extract_strided_slice %22 {offsets = [2, 0], sizes = [1, 3], strides = [1, 1]} : vector<3x3xf32> to vector<1x3xf32>
    %121 = vector.broadcast %110 : vector<2x1xf32> to vector<2x3xf32>
    %122 = vector.broadcast %120 : vector<1x3xf32> to vector<2x3xf32>
    %123 = arith.mulf %121, %122 : vector<2x3xf32>
    %124 = arith.addf %119, %123 : vector<2x3xf32>
    %125 = vector.extract_strided_slice %124 {offsets = [0, 0], sizes = [2, 1], strides = [1, 1]} : vector<2x3xf32> to vector<2x1xf32>
    %126 = arith.mulf %125, %96 : vector<2x1xf32>
    %127 = vector.extract_strided_slice %124 {offsets = [0, 1], sizes = [2, 1], strides = [1, 1]} : vector<2x3xf32> to vector<2x1xf32>
    %128 = arith.mulf %127, %103 : vector<2x1xf32>
    %129 = arith.addf %126, %128 : vector<2x1xf32>
    %130 = vector.extract_strided_slice %124 {offsets = [0, 2], sizes = [2, 1], strides = [1, 1]} : vector<2x3xf32> to vector<2x1xf32>
    %131 = arith.mulf %130, %110 : vector<2x1xf32>
    %132 = arith.addf %129, %131 : vector<2x1xf32>
    %133 = vector.extract_strided_slice %23 {offsets = [0, 0], sizes = [1, 10], strides = [1, 1]} : vector<3x10xf32> to vector<1x10xf32>
    %134 = vector.broadcast %96 : vector<2x1xf32> to vector<2x10xf32>
    %135 = vector.broadcast %133 : vector<1x10xf32> to vector<2x10xf32>
    %136 = arith.mulf %134, %135 : vector<2x10xf32>
    %137 = vector.extract_strided_slice %23 {offsets = [1, 0], sizes = [1, 10], strides = [1, 1]} : vector<3x10xf32> to vector<1x10xf32>
    %138 = vector.broadcast %103 : vector<2x1xf32> to vector<2x10xf32>
    %139 = vector.broadcast %137 : vector<1x10xf32> to vector<2x10xf32>
    %140 = arith.mulf %138, %139 : vector<2x10xf32>
    %141 = arith.addf %136, %140 : vector<2x10xf32>
    %142 = vector.extract_strided_slice %23 {offsets = [2, 0], sizes = [1, 10], strides = [1, 1]} : vector<3x10xf32> to vector<1x10xf32>
    %143 = vector.broadcast %110 : vector<2x1xf32> to vector<2x10xf32>
    %144 = vector.broadcast %142 : vector<1x10xf32> to vector<2x10xf32>
    %145 = arith.mulf %143, %144 : vector<2x10xf32>
    %146 = arith.addf %141, %145 : vector<2x10xf32>
    %cst_32 = arith.constant 5.000000e-01 : f32
    %147 = vector.broadcast %cst_32 : f32 to vector<2x1xf32>
    %148 = arith.mulf %147, %132 : vector<2x1xf32>
    %149 = vector.broadcast %148 : vector<2x1xf32> to vector<2x10xf32>
    %150 = arith.subf %149, %146 : vector<2x10xf32>
    %151 = vector.broadcast %24 : vector<1x10xf32> to vector<2x10xf32>
    %152 = arith.addf %150, %151 : vector<2x10xf32>
    %cst_33 = arith.constant -5.000000e-01 : f32
    %153 = vector.broadcast %cst_33 : f32 to vector<2x10xf32>
    %154 = arith.mulf %153, %152 : vector<2x10xf32>
    %cst_34 = arith.constant dense<0xFF800000> : vector<2xf32>
    %155 = vector.multi_reduction <maximumf>, %154, %cst_34 [1] : vector<2x10xf32> to vector<2xf32>
    %156 = vector.shape_cast %155 : vector<2xf32> to vector<2x1xf32>
    %157 = vector.extract_strided_slice %1 {offsets = [0, 0], sizes = [1, 1], strides = [1, 1]} : vector<1x2xf32> to vector<1x1xf32>
    %158 = vector.broadcast %157 : vector<1x1xf32> to vector<2x1xf32>
    %159 = arith.mulf %156, %158 : vector<2x1xf32>
    %160 = arith.addf %21, %159 : vector<2x1xf32>
    %c0_35 = arith.constant 0 : index
    %c0_36 = arith.constant 0 : index
    %161 = vector.load %arg9[%c0_35, %c0_36] : memref<3x3xf32, #tpu.memory_space<vmem>>, vector<3x3xf32>
    %c0_37 = arith.constant 0 : index
    %c0_38 = arith.constant 0 : index
    %162 = vector.load %arg10[%c0_37, %c0_38] : memref<3x10xf32, #tpu.memory_space<vmem>>, vector<3x10xf32>
    %c0_39 = arith.constant 0 : index
    %c0_40 = arith.constant 0 : index
    %163 = vector.load %arg11[%c0_39, %c0_40] : memref<1x10xf32, #tpu.memory_space<vmem>>, vector<1x10xf32>
    %c0_41 = arith.constant 0 : index
    %c0_42 = arith.constant 0 : index
    %164 = vector.load %arg12[%c0_41, %c0_42] : memref<10x3xf32, #tpu.memory_space<vmem>>, vector<10x3xf32>
    %165 = vector.extract_strided_slice %161 {offsets = [0, 0], sizes = [1, 3], strides = [1, 1]} : vector<3x3xf32> to vector<1x3xf32>
    %166 = vector.broadcast %8 : vector<2x1xf32> to vector<2x3xf32>
    %167 = vector.broadcast %165 : vector<1x3xf32> to vector<2x3xf32>
    %168 = arith.mulf %166, %167 : vector<2x3xf32>
    %169 = vector.extract_strided_slice %161 {offsets = [1, 0], sizes = [1, 3], strides = [1, 1]} : vector<3x3xf32> to vector<1x3xf32>
    %170 = vector.broadcast %13 : vector<2x1xf32> to vector<2x3xf32>
    %171 = vector.broadcast %169 : vector<1x3xf32> to vector<2x3xf32>
    %172 = arith.mulf %170, %171 : vector<2x3xf32>
    %173 = arith.addf %168, %172 : vector<2x3xf32>
    %174 = vector.extract_strided_slice %161 {offsets = [2, 0], sizes = [1, 3], strides = [1, 1]} : vector<3x3xf32> to vector<1x3xf32>
    %175 = vector.broadcast %18 : vector<2x1xf32> to vector<2x3xf32>
    %176 = vector.broadcast %174 : vector<1x3xf32> to vector<2x3xf32>
    %177 = arith.mulf %175, %176 : vector<2x3xf32>
    %178 = arith.addf %173, %177 : vector<2x3xf32>
    %179 = vector.extract_strided_slice %178 {offsets = [0, 0], sizes = [2, 1], strides = [1, 1]} : vector<2x3xf32> to vector<2x1xf32>
    %180 = arith.mulf %179, %8 : vector<2x1xf32>
    %181 = vector.extract_strided_slice %178 {offsets = [0, 1], sizes = [2, 1], strides = [1, 1]} : vector<2x3xf32> to vector<2x1xf32>
    %182 = arith.mulf %181, %13 : vector<2x1xf32>
    %183 = arith.addf %180, %182 : vector<2x1xf32>
    %184 = vector.extract_strided_slice %178 {offsets = [0, 2], sizes = [2, 1], strides = [1, 1]} : vector<2x3xf32> to vector<2x1xf32>
    %185 = arith.mulf %184, %18 : vector<2x1xf32>
    %186 = arith.addf %183, %185 : vector<2x1xf32>
    %187 = vector.extract_strided_slice %162 {offsets = [0, 0], sizes = [1, 10], strides = [1, 1]} : vector<3x10xf32> to vector<1x10xf32>
    %188 = vector.broadcast %8 : vector<2x1xf32> to vector<2x10xf32>
    %189 = vector.broadcast %187 : vector<1x10xf32> to vector<2x10xf32>
    %190 = arith.mulf %188, %189 : vector<2x10xf32>
    %191 = vector.extract_strided_slice %162 {offsets = [1, 0], sizes = [1, 10], strides = [1, 1]} : vector<3x10xf32> to vector<1x10xf32>
    %192 = vector.broadcast %13 : vector<2x1xf32> to vector<2x10xf32>
    %193 = vector.broadcast %191 : vector<1x10xf32> to vector<2x10xf32>
    %194 = arith.mulf %192, %193 : vector<2x10xf32>
    %195 = arith.addf %190, %194 : vector<2x10xf32>
    %196 = vector.extract_strided_slice %162 {offsets = [2, 0], sizes = [1, 10], strides = [1, 1]} : vector<3x10xf32> to vector<1x10xf32>
    %197 = vector.broadcast %18 : vector<2x1xf32> to vector<2x10xf32>
    %198 = vector.broadcast %196 : vector<1x10xf32> to vector<2x10xf32>
    %199 = arith.mulf %197, %198 : vector<2x10xf32>
    %200 = arith.addf %195, %199 : vector<2x10xf32>
    %cst_43 = arith.constant 5.000000e-01 : f32
    %201 = vector.broadcast %cst_43 : f32 to vector<2x1xf32>
    %202 = arith.mulf %201, %186 : vector<2x1xf32>
    %203 = vector.broadcast %202 : vector<2x1xf32> to vector<2x10xf32>
    %204 = arith.subf %203, %200 : vector<2x10xf32>
    %205 = vector.broadcast %163 : vector<1x10xf32> to vector<2x10xf32>
    %206 = arith.addf %204, %205 : vector<2x10xf32>
    %cst_44 = arith.constant -5.000000e-01 : f32
    %207 = vector.broadcast %cst_44 : f32 to vector<2x10xf32>
    %208 = arith.mulf %207, %206 : vector<2x10xf32>
    %cst_45 = arith.constant dense<0xFF800000> : vector<2xf32>
    %209 = vector.multi_reduction <maximumf>, %208, %cst_45 [1] : vector<2x10xf32> to vector<2xf32>
    %210 = vector.shape_cast %209 : vector<2xf32> to vector<2x1xf32>
    %211 = tpu.iota {dimensions = array<i32: 1>} : vector<2x10xi32>
    %212 = vector.broadcast %210 : vector<2x1xf32> to vector<2x10xf32>
    %213 = arith.cmpf oge, %208, %212 : vector<2x10xf32>
    %c10_i32_46 = arith.constant 10 : i32
    %214 = vector.broadcast %c10_i32_46 : i32 to vector<2x10xi32>
    %215 = arith.select %213, %211, %214 : vector<2x10xi1>, vector<2x10xi32>
    %cst_47 = arith.constant dense<2147483647> : vector<2xi32>
    %216 = vector.multi_reduction <minsi>, %215, %cst_47 [1] : vector<2x10xi32> to vector<2xi32>
    %217 = vector.shape_cast %216 : vector<2xi32> to vector<2x1xi32>
    %218 = vector.broadcast %217 : vector<2x1xi32> to vector<2x10xi32>
    %219 = arith.cmpi eq, %211, %218 : vector<2x10xi32>
    %220 = arith.extui %219 : vector<2x10xi1> to vector<2x10xi32>
    %221 = arith.sitofp %220 : vector<2x10xi32> to vector<2x10xf32>
    %cst_48 = arith.constant dense<0.000000e+00> : vector<2x3xf32>
    %222 = tpu.matmul %221, %164, %cst_48 {dimension_numbers = #tpu.dot_dimension_numbers<[1], [0], [0], [1], [0, 0, 1, 1], [], []>} : vector<2x10xf32>, vector<10x3xf32>, vector<2x3xf32> -> vector<2x3xf32>
    %223 = arith.subf %178, %222 : vector<2x3xf32>
    %cst_49 = arith.constant 0.000000e+00 : f32
    %224 = vector.broadcast %cst_49 : f32 to vector<2x3xf32>
    %225 = arith.cmpf oge, %223, %224 : vector<2x3xf32>
    %cst_50 = arith.constant 1.000000e+00 : f32
    %cst_51 = arith.constant -1.000000e+00 : f32
    %226 = vector.broadcast %cst_50 : f32 to vector<2x3xf32>
    %227 = vector.broadcast %cst_51 : f32 to vector<2x3xf32>
    %228 = arith.select %225, %226, %227 : vector<2x3xi1>, vector<2x3xf32>
    %229 = vector.extract_strided_slice %228 {offsets = [0, 0], sizes = [2, 1], strides = [1, 1]} : vector<2x3xf32> to vector<2x1xf32>
    %cst_52 = arith.constant 1.000000e-03 : f32
    %230 = vector.broadcast %cst_52 : f32 to vector<2x1xf32>
    %231 = arith.mulf %230, %229 : vector<2x1xf32>
    %232 = vector.extract_strided_slice %0 {offsets = [0, 0], sizes = [1, 1], strides = [1, 1]} : vector<1x3xf32> to vector<1x1xf32>
    %233 = vector.broadcast %232 : vector<1x1xf32> to vector<2x1xf32>
    %234 = arith.mulf %231, %233 : vector<2x1xf32>
    %235 = arith.subf %8, %234 : vector<2x1xf32>
    %236 = vector.extract_strided_slice %228 {offsets = [0, 1], sizes = [2, 1], strides = [1, 1]} : vector<2x3xf32> to vector<2x1xf32>
    %cst_53 = arith.constant 1.000000e-03 : f32
    %237 = vector.broadcast %cst_53 : f32 to vector<2x1xf32>
    %238 = arith.mulf %237, %236 : vector<2x1xf32>
    %239 = vector.extract_strided_slice %0 {offsets = [0, 1], sizes = [1, 1], strides = [1, 1]} : vector<1x3xf32> to vector<1x1xf32>
    %240 = vector.broadcast %239 : vector<1x1xf32> to vector<2x1xf32>
    %241 = arith.mulf %238, %240 : vector<2x1xf32>
    %242 = arith.subf %13, %241 : vector<2x1xf32>
    %243 = vector.extract_strided_slice %228 {offsets = [0, 2], sizes = [2, 1], strides = [1, 1]} : vector<2x3xf32> to vector<2x1xf32>
    %cst_54 = arith.constant 1.000000e-03 : f32
    %244 = vector.broadcast %cst_54 : f32 to vector<2x1xf32>
    %245 = arith.mulf %244, %243 : vector<2x1xf32>
    %246 = vector.extract_strided_slice %0 {offsets = [0, 2], sizes = [1, 1], strides = [1, 1]} : vector<1x3xf32> to vector<1x1xf32>
    %247 = vector.broadcast %246 : vector<1x1xf32> to vector<2x1xf32>
    %248 = arith.mulf %245, %247 : vector<2x1xf32>
    %249 = arith.subf %18, %248 : vector<2x1xf32>
    %250 = vector.extract_strided_slice %161 {offsets = [0, 0], sizes = [1, 3], strides = [1, 1]} : vector<3x3xf32> to vector<1x3xf32>
    %251 = vector.broadcast %235 : vector<2x1xf32> to vector<2x3xf32>
    %252 = vector.broadcast %250 : vector<1x3xf32> to vector<2x3xf32>
    %253 = arith.mulf %251, %252 : vector<2x3xf32>
    %254 = vector.extract_strided_slice %161 {offsets = [1, 0], sizes = [1, 3], strides = [1, 1]} : vector<3x3xf32> to vector<1x3xf32>
    %255 = vector.broadcast %242 : vector<2x1xf32> to vector<2x3xf32>
    %256 = vector.broadcast %254 : vector<1x3xf32> to vector<2x3xf32>
    %257 = arith.mulf %255, %256 : vector<2x3xf32>
    %258 = arith.addf %253, %257 : vector<2x3xf32>
    %259 = vector.extract_strided_slice %161 {offsets = [2, 0], sizes = [1, 3], strides = [1, 1]} : vector<3x3xf32> to vector<1x3xf32>
    %260 = vector.broadcast %249 : vector<2x1xf32> to vector<2x3xf32>
    %261 = vector.broadcast %259 : vector<1x3xf32> to vector<2x3xf32>
    %262 = arith.mulf %260, %261 : vector<2x3xf32>
    %263 = arith.addf %258, %262 : vector<2x3xf32>
    %264 = vector.extract_strided_slice %263 {offsets = [0, 0], sizes = [2, 1], strides = [1, 1]} : vector<2x3xf32> to vector<2x1xf32>
    %265 = arith.mulf %264, %235 : vector<2x1xf32>
    %266 = vector.extract_strided_slice %263 {offsets = [0, 1], sizes = [2, 1], strides = [1, 1]} : vector<2x3xf32> to vector<2x1xf32>
    %267 = arith.mulf %266, %242 : vector<2x1xf32>
    %268 = arith.addf %265, %267 : vector<2x1xf32>
    %269 = vector.extract_strided_slice %263 {offsets = [0, 2], sizes = [2, 1], strides = [1, 1]} : vector<2x3xf32> to vector<2x1xf32>
    %270 = arith.mulf %269, %249 : vector<2x1xf32>
    %271 = arith.addf %268, %270 : vector<2x1xf32>
    %272 = vector.extract_strided_slice %162 {offsets = [0, 0], sizes = [1, 10], strides = [1, 1]} : vector<3x10xf32> to vector<1x10xf32>
    %273 = vector.broadcast %235 : vector<2x1xf32> to vector<2x10xf32>
    %274 = vector.broadcast %272 : vector<1x10xf32> to vector<2x10xf32>
    %275 = arith.mulf %273, %274 : vector<2x10xf32>
    %276 = vector.extract_strided_slice %162 {offsets = [1, 0], sizes = [1, 10], strides = [1, 1]} : vector<3x10xf32> to vector<1x10xf32>
    %277 = vector.broadcast %242 : vector<2x1xf32> to vector<2x10xf32>
    %278 = vector.broadcast %276 : vector<1x10xf32> to vector<2x10xf32>
    %279 = arith.mulf %277, %278 : vector<2x10xf32>
    %280 = arith.addf %275, %279 : vector<2x10xf32>
    %281 = vector.extract_strided_slice %162 {offsets = [2, 0], sizes = [1, 10], strides = [1, 1]} : vector<3x10xf32> to vector<1x10xf32>
    %282 = vector.broadcast %249 : vector<2x1xf32> to vector<2x10xf32>
    %283 = vector.broadcast %281 : vector<1x10xf32> to vector<2x10xf32>
    %284 = arith.mulf %282, %283 : vector<2x10xf32>
    %285 = arith.addf %280, %284 : vector<2x10xf32>
    %cst_55 = arith.constant 5.000000e-01 : f32
    %286 = vector.broadcast %cst_55 : f32 to vector<2x1xf32>
    %287 = arith.mulf %286, %271 : vector<2x1xf32>
    %288 = vector.broadcast %287 : vector<2x1xf32> to vector<2x10xf32>
    %289 = arith.subf %288, %285 : vector<2x10xf32>
    %290 = vector.broadcast %163 : vector<1x10xf32> to vector<2x10xf32>
    %291 = arith.addf %289, %290 : vector<2x10xf32>
    %cst_56 = arith.constant -5.000000e-01 : f32
    %292 = vector.broadcast %cst_56 : f32 to vector<2x10xf32>
    %293 = arith.mulf %292, %291 : vector<2x10xf32>
    %cst_57 = arith.constant dense<0xFF800000> : vector<2xf32>
    %294 = vector.multi_reduction <maximumf>, %293, %cst_57 [1] : vector<2x10xf32> to vector<2xf32>
    %295 = vector.shape_cast %294 : vector<2xf32> to vector<2x1xf32>
    %296 = vector.extract_strided_slice %1 {offsets = [0, 1], sizes = [1, 1], strides = [1, 1]} : vector<1x2xf32> to vector<1x1xf32>
    %297 = vector.broadcast %296 : vector<1x1xf32> to vector<2x1xf32>
    %298 = arith.mulf %295, %297 : vector<2x1xf32>
    %299 = arith.addf %160, %298 : vector<2x1xf32>
    %300 = arith.negf %299 : vector<2x1xf32>
    %301 = math.exp %300 : vector<2x1xf32>
    %cst_58 = arith.constant 1.000000e+00 : f32
    %302 = vector.broadcast %cst_58 : f32 to vector<2x1xf32>
    %303 = arith.addf %302, %301 : vector<2x1xf32>
    %304 = arith.divf %302, %303 : vector<2x1xf32>
    %c0_59 = arith.constant 0 : index
    %c0_60 = arith.constant 0 : index
    %305 = vector.load %arg13[%c0_59, %c0_60] : memref<2x1xf32, #tpu.memory_space<vmem>>, vector<2x1xf32>
    tpu.vector_store %arg13[%c0_59, %c0_60], %304 {strides = array<i32>} : memref<2x1xf32, #tpu.memory_space<vmem>>, vector<2x1xf32>,
    return
  }
  func.func @transform_0(%arg0: i32) -> (i32, i32) {
    %c0_i32 = arith.constant 0 : i32
    %c0_i32_0 = arith.constant 0 : i32
    return %arg0, %c0_i32 : i32, i32
  }
  func.func @transform_1(%arg0: i32) -> (i32, i32) {
    %c0_i32 = arith.constant 0 : i32
    %c0_i32_0 = arith.constant 0 : i32
    %c0_i32_1 = arith.constant 0 : i32
    return %c0_i32, %c0_i32_0 : i32, i32
  }
  func.func @transform_2(%arg0: i32) -> (i32, i32) {
    %c0_i32 = arith.constant 0 : i32
    %c0_i32_0 = arith.constant 0 : i32
    %c0_i32_1 = arith.constant 0 : i32
    return %c0_i32, %c0_i32_0 : i32, i32
  }
  func.func @transform_3(%arg0: i32) -> (i32, i32) {
    %c0_i32 = arith.constant 0 : i32
    %c0_i32_0 = arith.constant 0 : i32
    %c0_i32_1 = arith.constant 0 : i32
    return %c0_i32, %c0_i32_0 : i32, i32
  }
  func.func @transform_4(%arg0: i32) -> (i32, i32) {
    %c0_i32 = arith.constant 0 : i32
    %c0_i32_0 = arith.constant 0 : i32
    %c0_i32_1 = arith.constant 0 : i32
    return %c0_i32, %c0_i32_0 : i32, i32
  }
  func.func @transform_5(%arg0: i32) -> (i32, i32) {
    %c0_i32 = arith.constant 0 : i32
    %c0_i32_0 = arith.constant 0 : i32
    %c0_i32_1 = arith.constant 0 : i32
    return %c0_i32, %c0_i32_0 : i32, i32
  }
  func.func @transform_6(%arg0: i32) -> (i32, i32) {
    %c0_i32 = arith.constant 0 : i32
    %c0_i32_0 = arith.constant 0 : i32
    %c0_i32_1 = arith.constant 0 : i32
    return %c0_i32, %c0_i32_0 : i32, i32
  }
  func.func @transform_7(%arg0: i32) -> (i32, i32) {
    %c0_i32 = arith.constant 0 : i32
    %c0_i32_0 = arith.constant 0 : i32
    %c0_i32_1 = arith.constant 0 : i32
    return %c0_i32, %c0_i32_0 : i32, i32
  }
  func.func @transform_8(%arg0: i32) -> (i32, i32) {
    %c0_i32 = arith.constant 0 : i32
    %c0_i32_0 = arith.constant 0 : i32
    %c0_i32_1 = arith.constant 0 : i32
    return %c0_i32, %c0_i32_0 : i32, i32
  }
  func.func @transform_9(%arg0: i32) -> (i32, i32) {
    %c0_i32 = arith.constant 0 : i32
    %c0_i32_0 = arith.constant 0 : i32
    %c0_i32_1 = arith.constant 0 : i32
    return %c0_i32, %c0_i32_0 : i32, i32
  }
  func.func @transform_10(%arg0: i32) -> (i32, i32) {
    %c0_i32 = arith.constant 0 : i32
    %c0_i32_0 = arith.constant 0 : i32
    %c0_i32_1 = arith.constant 0 : i32
    return %c0_i32, %c0_i32_0 : i32, i32
  }
  func.func @transform_11(%arg0: i32) -> (i32, i32) {
    %c0_i32 = arith.constant 0 : i32
    %c0_i32_0 = arith.constant 0 : i32
    %c0_i32_1 = arith.constant 0 : i32
    return %c0_i32, %c0_i32_0 : i32, i32
  }
  func.func @transform_12(%arg0: i32) -> (i32, i32) {
    %c0_i32 = arith.constant 0 : i32
    %c0_i32_0 = arith.constant 0 : i32
    return %arg0, %c0_i32 : i32, i32
  }
}

</mosaic_0001>

<llo_original>
// kernel: tpu_custom_call.1
$region0: #{tpu_custom_call.1}
  #allocation0 [shape = 'u32[]', space=smem, size = 0x4, offset = 0x4, fixed_abs, tag = 'smem constant byte address 0x4 - core index']
  #allocation1 [shape = 'u32[144,128]{1,0:T(1,128)}', space=vmem, size = 0x12000, scoped, tag = 'internal scratch']
  #allocation2 [shape = 'f32[1,1]{1,0:T(1,128)S(1)}', space=vmem, size = 0x200, scoped, tag = 'scoped memory for tpu_custom_call.1']
  %s0 = inlined_call_operand.vmem [shape: f32[2,768], index: 0, kind: input, shape index: {}]
  %s1 = inlined_call_operand.vmem [shape: f32[1,3], index: 1, kind: input, shape index: {}]
  %s2 = inlined_call_operand.vmem [shape: f32[1,2], index: 2, kind: input, shape index: {}]
  %s3 = inlined_call_operand.<no memory space> [shape: f32[1,1], index: 3, kind: input, shape index: {}]
  %s4 = inlined_call_operand.vmem [shape: f32[3,3], index: 4, kind: input, shape index: {}]
  %s5 = inlined_call_operand.vmem [shape: f32[3,10], index: 5, kind: input, shape index: {}]
  %s6 = inlined_call_operand.vmem [shape: f32[1,10], index: 6, kind: input, shape index: {}]
  %s7 = inlined_call_operand.vmem [shape: f32[10,3], index: 7, kind: input, shape index: {}]
  %s8 = inlined_call_operand.vmem [shape: f32[3,3], index: 8, kind: input, shape index: {}]
  %s9 = inlined_call_operand.vmem [shape: f32[3,10], index: 9, kind: input, shape index: {}]
  %s10 = inlined_call_operand.vmem [shape: f32[1,10], index: 10, kind: input, shape index: {}]
  %s11 = inlined_call_operand.vmem [shape: f32[10,3], index: 11, kind: input, shape index: {}]
  %s12 = inlined_call_operand.vmem [shape: f32[2,1], index: 12, kind: output, shape index: {}]
  %s13 = sld [smem:[#allocation0]]
  $region58: #{tpu_custom_call.1} parent=0
    _
  %s15 = ssub.s32 1, %s13
  %s16 = scalar_select 0, %s15, %s13
  %v17 = vstv %s3
  %18 = vst [vmem:[#allocation2] sm:$0x1] %v17
  // Predicated region
  $region2: #{tpu_custom_call.1} parent=0 // pred_check
    _
  $region3: #{tpu_custom_call.1} parent=0 // pred_check_branch
    %20 = sbr.rel (0) target = $region5
  $region4: #{tpu_custom_call.1} parent=0 // pred_region
    _
  $region5: #{tpu_custom_call.1} parent=0 // pred_fallthru
    _
  // Predicated region
  $region6: #{tpu_custom_call.1} parent=0 // pred_check
    _
  $region7: #{tpu_custom_call.1} parent=0 // pred_check_branch
    %22 = sbr.rel (0) target = $region9
  $region8: #{tpu_custom_call.1} parent=0 // pred_region
    _
  $region9: #{tpu_custom_call.1} parent=0 // pred_fallthru
    _
  // Predicated region
  $region10: #{tpu_custom_call.1} parent=0 // pred_check
    _
  $region11: #{tpu_custom_call.1} parent=0 // pred_check_branch
    %24 = sbr.rel (0) target = $region13
  $region12: #{tpu_custom_call.1} parent=0 // pred_region
    _
  $region13: #{tpu_custom_call.1} parent=0 // pred_fallthru
    _
  // Predicated region
  $region14: #{tpu_custom_call.1} parent=0 // pred_check
    _
  $region15: #{tpu_custom_call.1} parent=0 // pred_check_branch
    %26 = sbr.rel (0) target = $region17
  $region16: #{tpu_custom_call.1} parent=0 // pred_region
    _
  $region17: #{tpu_custom_call.1} parent=0 // pred_fallthru
    _
  // Predicated region
  $region18: #{tpu_custom_call.1} parent=0 // pred_check
    _
  $region19: #{tpu_custom_call.1} parent=0 // pred_check_branch
    %28 = sbr.rel (0) target = $region21
  $region20: #{tpu_custom_call.1} parent=0 // pred_region
    _
  $region21: #{tpu_custom_call.1} parent=0 // pred_fallthru
    _
  // Predicated region
  $region22: #{tpu_custom_call.1} parent=0 // pred_check
    _
  $region23: #{tpu_custom_call.1} parent=0 // pred_check_branch
    %30 = sbr.rel (0) target = $region25
  $region24: #{tpu_custom_call.1} parent=0 // pred_region
    _
  $region25: #{tpu_custom_call.1} parent=0 // pred_fallthru
    _
  // Predicated region
  $region26: #{tpu_custom_call.1} parent=0 // pred_check
    _
  $region27: #{tpu_custom_call.1} parent=0 // pred_check_branch
    %32 = sbr.rel (0) target = $region29
  $region28: #{tpu_custom_call.1} parent=0 // pred_region
    _
  $region29: #{tpu_custom_call.1} parent=0 // pred_fallthru
    _
  // Predicated region
  $region30: #{tpu_custom_call.1} parent=0 // pred_check
    _
  $region31: #{tpu_custom_call.1} parent=0 // pred_check_branch
    %34 = sbr.rel (0) target = $region33
  $region32: #{tpu_custom_call.1} parent=0 // pred_region
    _
  $region33: #{tpu_custom_call.1} parent=0 // pred_fallthru
    _
  // Predicated region
  $region34: #{tpu_custom_call.1} parent=0 // pred_check
    _
  $region35: #{tpu_custom_call.1} parent=0 // pred_check_branch
    %36 = sbr.rel (0) target = $region37
  $region36: #{tpu_custom_call.1} parent=0 // pred_region
    _
  $region37: #{tpu_custom_call.1} parent=0 // pred_fallthru
    _
  // Predicated region
  $region38: #{tpu_custom_call.1} parent=0 // pred_check
    _
  $region39: #{tpu_custom_call.1} parent=0 // pred_check_branch
    %38 = sbr.rel (0) target = $region41
  $region40: #{tpu_custom_call.1} parent=0 // pred_region
    _
  $region41: #{tpu_custom_call.1} parent=0 // pred_fallthru
    _
  // Predicated region
  $region42: #{tpu_custom_call.1} parent=0 // pred_check
    _
  $region43: #{tpu_custom_call.1} parent=0 // pred_check_branch
    %40 = sbr.rel (0) target = $region45
  $region44: #{tpu_custom_call.1} parent=0 // pred_region
    _
  $region45: #{tpu_custom_call.1} parent=0 // pred_fallthru
    _
  // Predicated region
  $region46: #{tpu_custom_call.1} parent=0 // pred_check
    _
  $region47: #{tpu_custom_call.1} parent=0 // pred_check_branch
    %42 = sbr.rel (0) target = $region49
  $region48: #{tpu_custom_call.1} parent=0 // pred_region
    _
  $region49: #{tpu_custom_call.1} parent=0 // pred_fallthru
    _
  %v43 = vld [vmem:[%s1] sm:$0x1]
  %v44 = vld [vmem:[%s2] sm:$0x1]
  %v45 = vld [vmem:[#allocation2] sm:$0x1]
  %v46 = vld [vmem:[%s0] sm:$0xff]
  %v47 = vld [vmem:[%s0 + $0x8] sm:$0xf]
  %v50 = vunpack.c.l.s4 1983009808
  %v51 = vunpack.c.0.s8 %v50
  %v52 = vlaneseq
  %v53 = vshrl.u32 %v52, 7
  %v54 = vsub.s32 %v51, %v53
  %v55 = vrot.slane %v46, %v54
  %v56 = vcombine.high %v55, %v55
  %vm59 = vcmask 1041408
  %v60 = vsel %vm59, %v55, 0.0
  %v61 = vsel %vm59, %v56, 0.0
  %v62 = vadd.f32 %v60, %v61
  %63 = vadd.xlane.f32.xlu0 %v62
  %v64 = vpop.xlane.xlu0 %63
  %v65 = vrcp.pop 256.0
  %v66 = vmul.f32 %v64, %v65
  %v67 = vcombine.high %v46, %v46
  %v69 = vunpack.c.l.s4 1983009808
  %v70 = vunpack.c.0.s8 %v69
  %v71 = vlaneseq
  %v72 = vshrl.u32 %v71, 7
  %v73 = vsub.s32 %v70, %v72
  %v74 = vrot.slane %v67, %v73
  %v75 = vcombine.high %v74, %v74
  %v78 = vsel %vm59, %v74, 0.0
  %v79 = vsel %vm59, %v75, 0.0
  %v80 = vadd.f32 %v78, %v79
  %81 = vadd.xlane.f32.xlu0 %v80
  %v82 = vpop.xlane.xlu0 %81
  %v83 = vmul.f32 %v82, %v65
  %v86 = vunpack.c.l.s4 1983009808
  %v87 = vunpack.c.0.s8 %v86
  %v88 = vlaneseq
  %v89 = vshrl.u32 %v88, 7
  %v90 = vsub.s32 %v87, %v89
  %v91 = vrot.slane %v47, %v90
  %v92 = vcombine.high %v91, %v91
  %v95 = vsel %vm59, %v91, 0.0
  %v96 = vsel %vm59, %v92, 0.0
  %v97 = vadd.f32 %v95, %v96
  %98 = vadd.xlane.f32.xlu0 %v97
  %v99 = vpop.xlane.xlu0 %98
  %v100 = vmul.f32 %v99, %v65
  %v102 = vlaneseq
  %v103 = vshrl.u32 %v102, 7
  %v104 = vsub.s32 0, %v103
  %v105 = vrot.slane %v45, %v104
  %v107 = vadd.f32 %v105, 0.0
  %v108 = vld [vmem:[%s4] sm:$0x7]
  %v109 = vld [vmem:[%s5] sm:$0x7]
  %v110 = vld [vmem:[%s6] sm:$0x1]
  %v111 = vld [vmem:[%s7] sm:$0xff]
  %v112 = vld [vmem:[%s7 + $0x8] sm:$0x3]
  %v113 = vlaneseq
  %v114 = vshrl.u32 %v113, 7
  %v115 = vsub.s32 0, %v114
  %v116 = vrot.slane %v108, %v115
  %v117 = vmul.f32 %v66, %v116
  %v118 = vlaneseq
  %v119 = vshrl.u32 %v118, 7
  %v120 = vsub.s32 1, %v119
  %v121 = vrot.slane %v108, %v120
  %v122 = vmul.f32 %v83, %v121
  %v123 = vadd.f32 %v117, %v122
  %v124 = vlaneseq
  %v125 = vshrl.u32 %v124, 7
  %v126 = vsub.s32 2, %v125
  %v127 = vrot.slane %v108, %v126
  %v128 = vmul.f32 %v100, %v127
  %v129 = vadd.f32 %v123, %v128
  %v130 = vmul.f32 %v129, %v66
  %v131 = vmul.f32 %v129, %v83
  %133 = vrot.lane.b32.xlu0 %v131, 127
  %v134 = vpop.permute.xlu0 %133
  %v136 = vadd.f32 %v130, %v134
  %v137 = vmul.f32 %v129, %v100
  %139 = vrot.lane.b32.xlu0 %v137, 126
  %v140 = vpop.permute.xlu0 %139
  %v142 = vadd.f32 %v136, %v140
  %v143 = vlaneseq
  %v144 = vshrl.u32 %v143, 7
  %v145 = vsub.s32 0, %v144
  %v146 = vrot.slane %v109, %v145
  %v147 = vmul.f32 %v66, %v146
  %v148 = vlaneseq
  %v149 = vshrl.u32 %v148, 7
  %v150 = vsub.s32 1, %v149
  %v151 = vrot.slane %v109, %v150
  %v152 = vmul.f32 %v83, %v151
  %v153 = vadd.f32 %v147, %v152
  %v154 = vlaneseq
  %v155 = vshrl.u32 %v154, 7
  %v156 = vsub.s32 2, %v155
  %v157 = vrot.slane %v109, %v156
  %v158 = vmul.f32 %v100, %v157
  %v159 = vadd.f32 %v153, %v158
  %v160 = vmul.f32 %v142, 0.5
  %162 = vset.pattern.permute.xlu0 0
  %163 = vperm.xlu0 %162, %v160
  %v164 = vpop.permute.xlu0 %163
  %v166 = vsub.f32 %v164, %v159
  %v168 = vlaneseq
  %v169 = vshrl.u32 %v168, 7
  %v170 = vsub.s32 0, %v169
  %v171 = vrot.slane %v110, %v170
  %v173 = vadd.f32 %v166, %v171
  %v174 = vmul.f32 %v173, -0.5
  %vm175 = vcmask 74752
  %v176 = vsel %vm175, %v174, -inf
  %177 = vmax.xlane.f32.xlu0 %v176
  %v178 = vpop.xlane.xlu0 %177
  %v179 = vlaneseq
  %v180 = vand.u32 %v179, 127
  %vm181 = vcmp.ge.f32.partialorder %v174, %v178
  %v182 = vsel %vm181, %v180, 10
  %v183 = vsel %vm175, %v182, 2147483647
  %v184 = vand.u32 %v183, 65535
  %v185 = vshra.s32 %v183, 16
  %v186 = vcvt.s32.f32 %v184
  %v187 = vcvt.s32.f32 %v185
  %188 = vmin.xlane.f32.xlu0 %v187
  %v189 = vpop.xlane.xlu0 %188
  %vm190 = vcmp.eq.f32.partialorder %v187, %v189
  %v191 = vsel %vm190, %v186, inf
  %192 = vmin.xlane.f32.xlu0 %v191
  %v193 = vpop.xlane.xlu0 %192
  %v194 = vcvt.f32.s32 %v193
  %v195 = vcvt.f32.s32 %v189
  %v196 = vshll.u32 %v195, 16
  %v197 = vadd.s32 %v196, %v194
  %vm198 = vcmp.eq.s32.totalorder %v180, %v197
  %v199 = vsel %vm198, 1, 0
  %v200 = vcvt.s32.f32 %v199
  %vm201 = vcmask 80896
  %v203 = vsel %vm201, %v200, 0
  %v206 = vsel %vm59, %v112, 0
  %208 = vmatprep.subr.mxu0 0.0
  %209 = vmatpush1.msra.mxu0 0.0
  %210 = vmatprep.subr.mxu0 0.0
  %211 = vmatpush1.msra.mxu0 0.0
  %212 = vmatprep.subr.mxu0 0.0
  %213 = vmatpush1.msra.mxu0 0.0
  %214 = vmatprep.subr.mxu0 0.0
  %215 = vmatpush1.msra.mxu0 0.0
  %216 = vmatprep.subr.mxu0 0.0
  %217 = vmatpush1.msra.mxu0 0.0
  %218 = vmatprep.subr.mxu0 0.0
  %219 = vmatpush1.msra.mxu0 0.0
  %220 = vmatprep.subr.mxu0 0.0
  %221 = vmatpush1.msra.mxu0 0.0
  %222 = vmatprep.subr.mxu0 0.0
  %223 = vmatpush1.msra.mxu0 0.0
  %224 = vmatprep.subr.mxu0 0.0
  %225 = vmatpush1.msra.mxu0 0.0
  %226 = vmatprep.subr.mxu0 0.0
  %227 = vmatpush1.msra.mxu0 0.0
  %228 = vmatprep.subr.mxu0 0.0
  %229 = vmatpush1.msra.mxu0 0.0
  %230 = vmatprep.subr.mxu0 0.0
  %231 = vmatpush1.msra.mxu0 0.0
  %232 = vmatprep.subr.mxu0 0.0
  %233 = vmatpush1.msra.mxu0 0.0
  %234 = vmatprep.subr.mxu0 0.0
  %235 = vmatpush1.msra.mxu0 0.0
  %236 = vmatprep.subr.mxu0 0.0
  %237 = vmatpush1.msra.mxu0 %v206
  %238 = vmatprep.subr.mxu0 0.0
  %239 = vmatpush1.msra.mxu0 %v111
  %240 = vmatprep.subr.mxu0 0.0
  %241 = vmatpush2.msra.mxu0 0.0
  %242 = vmatprep.subr.mxu0 0.0
  %243 = vmatpush2.msra.mxu0 0.0
  %244 = vmatprep.subr.mxu0 0.0
  %245 = vmatpush2.msra.mxu0 0.0
  %246 = vmatprep.subr.mxu0 0.0
  %247 = vmatpush2.msra.mxu0 0.0
  %248 = vmatprep.subr.mxu0 0.0
  %249 = vmatpush2.msra.mxu0 0.0
  %250 = vmatprep.subr.mxu0 0.0
  %251 = vmatpush2.msra.mxu0 0.0
  %252 = vmatprep.subr.mxu0 0.0
  %253 = vmatpush2.msra.mxu0 0.0
  %254 = vmatprep.subr.mxu0 0.0
  %255 = vmatpush2.msra.mxu0 0.0
  %256 = vmatprep.subr.mxu0 0.0
  %257 = vmatpush2.msra.mxu0 0.0
  %258 = vmatprep.subr.mxu0 0.0
  %259 = vmatpush2.msra.mxu0 0.0
  %260 = vmatprep.subr.mxu0 0.0
  %261 = vmatpush2.msra.mxu0 0.0
  %262 = vmatprep.subr.mxu0 0.0
  %263 = vmatpush2.msra.mxu0 0.0
  %264 = vmatprep.subr.mxu0 0.0
  %265 = vmatpush2.msra.mxu0 0.0
  %266 = vmatprep.subr.mxu0 0.0
  %267 = vmatpush2.msra.mxu0 0.0
  %268 = vmatprep.subr.mxu0 0.0
  %269 = vmatpush2.msra.mxu0 0.0
  %270 = vmatprep.subr.mxu0 0.0
  %271 = vmatpush2.msra.mxu0 0.0
  %272 = vmatprep.mubr.f32.mxu0 0.0
  %273 = vmatmul.mubr.f32.gmra.mxu0 %v203
  %v274 = vpop.f32.mrf.mxu0
  %v275 = vadd.f32 0.0, %v274
  %v276 = vpop.f32.mrf.mxu0
  %277 = vdwg.mxu0
  %v278 = vsub.f32 %v129, %v275
  %vm279 = vcmp.ge.f32.partialorder %v278, 0.0
  %v280 = vsel %vm279, 1.0, -1.0
  %v281 = vmul.f32 %v280, 0.001
  %v283 = vlaneseq
  %v284 = vshrl.u32 %v283, 7
  %v285 = vsub.s32 0, %v284
  %v286 = vrot.slane %v43, %v285
  %v288 = vmul.f32 %v281, %v286
  %v289 = vsub.f32 %v66, %v288
  %v290 = vsub.f32 %v83, %v288
  %v291 = vsub.f32 %v100, %v288
  %293 = vset.pattern.permute.xlu0 0
  %294 = vperm.xlu0 %293, %v289
  %v295 = vpop.permute.xlu0 %294
  %v297 = vmul.f32 %v295, %v116
  %299 = vset.pattern.permute.xlu0 1
  %300 = vperm.xlu0 %299, %v290
  %v301 = vpop.permute.xlu0 %300
  %v303 = vmul.f32 %v301, %v121
  %v304 = vadd.f32 %v297, %v303
  %306 = vset.pattern.permute.xlu0 2
  %307 = vperm.xlu0 %306, %v291
  %v308 = vpop.permute.xlu0 %307
  %v310 = vmul.f32 %v308, %v127
  %v311 = vadd.f32 %v304, %v310
  %v312 = vmul.f32 %v311, %v289
  %v313 = vmul.f32 %v311, %v290
  %315 = vrot.lane.b32.xlu0 %v313, 127
  %v316 = vpop.permute.xlu0 %315
  %v318 = vadd.f32 %v312, %v316
  %v319 = vmul.f32 %v311, %v291
  %321 = vrot.lane.b32.xlu0 %v319, 126
  %v322 = vpop.permute.xlu0 %321
  %v324 = vadd.f32 %v318, %v322
  %v325 = vmul.f32 %v295, %v146
  %v326 = vmul.f32 %v301, %v151
  %v327 = vadd.f32 %v325, %v326
  %v328 = vmul.f32 %v308, %v157
  %v329 = vadd.f32 %v327, %v328
  %v330 = vmul.f32 %v324, 0.5
  %332 = vset.pattern.permute.xlu0 0
  %333 = vperm.xlu0 %332, %v330
  %v334 = vpop.permute.xlu0 %333
  %v336 = vsub.f32 %v334, %v329
  %v337 = vadd.f32 %v336, %v171
  %v338 = vmul.f32 %v337, -0.5
  %v339 = vsel %vm175, %v338, -inf
  %340 = vmax.xlane.f32.xlu0 %v339
  %v341 = vpop.xlane.xlu0 %340
  %v343 = vlaneseq
  %v344 = vshrl.u32 %v343, 7
  %v345 = vsub.s32 0, %v344
  %v346 = vrot.slane %v44, %v345
  %v348 = vmul.f32 %v341, %v346
  %v349 = vadd.f32 %v107, %v348
  %v350 = vld [vmem:[%s8] sm:$0x7]
  %v351 = vld [vmem:[%s9] sm:$0x7]
  %v352 = vld [vmem:[%s10] sm:$0x1]
  %v353 = vld [vmem:[%s11] sm:$0xff]
  %v354 = vld [vmem:[%s11 + $0x8] sm:$0x3]
  %v355 = vlaneseq
  %v356 = vshrl.u32 %v355, 7
  %v357 = vsub.s32 0, %v356
  %v358 = vrot.slane %v350, %v357
  %v359 = vmul.f32 %v66, %v358
  %v360 = vlaneseq
  %v361 = vshrl.u32 %v360, 7
  %v362 = vsub.s32 1, %v361
  %v363 = vrot.slane %v350, %v362
  %v364 = vmul.f32 %v83, %v363
  %v365 = vadd.f32 %v359, %v364
  %v366 = vlaneseq
  %v367 = vshrl.u32 %v366, 7
  %v368 = vsub.s32 2, %v367
  %v369 = vrot.slane %v350, %v368
  %v370 = vmul.f32 %v100, %v369
  %v371 = vadd.f32 %v365, %v370
  %v372 = vmul.f32 %v371, %v66
  %v373 = vmul.f32 %v371, %v83
  %375 = vrot.lane.b32.xlu0 %v373, 127
  %v376 = vpop.permute.xlu0 %375
  %v378 = vadd.f32 %v372, %v376
  %v379 = vmul.f32 %v371, %v100
  %381 = vrot.lane.b32.xlu0 %v379, 126
  %v382 = vpop.permute.xlu0 %381
  %v384 = vadd.f32 %v378, %v382
  %v385 = vlaneseq
  %v386 = vshrl.u32 %v385, 7
  %v387 = vsub.s32 0, %v386
  %v388 = vrot.slane %v351, %v387
  %v389 = vmul.f32 %v66, %v388
  %v390 = vlaneseq
  %v391 = vshrl.u32 %v390, 7
  %v392 = vsub.s32 1, %v391
  %v393 = vrot.slane %v351, %v392
  %v394 = vmul.f32 %v83, %v393
  %v395 = vadd.f32 %v389, %v394
  %v396 = vlaneseq
  %v397 = vshrl.u32 %v396, 7
  %v398 = vsub.s32 2, %v397
  %v399 = vrot.slane %v351, %v398
  %v400 = vmul.f32 %v100, %v399
  %v401 = vadd.f32 %v395, %v400
  %v402 = vmul.f32 %v384, 0.5
  %404 = vset.pattern.permute.xlu0 0
  %405 = vperm.xlu0 %404, %v402
  %v406 = vpop.permute.xlu0 %405
  %v408 = vsub.f32 %v406, %v401
  %v410 = vlaneseq
  %v411 = vshrl.u32 %v410, 7
  %v412 = vsub.s32 0, %v411
  %v413 = vrot.slane %v352, %v412
  %v415 = vadd.f32 %v408, %v413
  %v416 = vmul.f32 %v415, -0.5
  %v417 = vsel %vm175, %v416, -inf
  %418 = vmax.xlane.f32.xlu0 %v417
  %v419 = vpop.xlane.xlu0 %418
  %vm420 = vcmp.ge.f32.partialorder %v416, %v419
  %v421 = vsel %vm420, %v180, 10
  %v422 = vsel %vm175, %v421, 2147483647
  %v423 = vand.u32 %v422, 65535
  %v424 = vshra.s32 %v422, 16
  %v425 = vcvt.s32.f32 %v423
  %v426 = vcvt.s32.f32 %v424
  %427 = vmin.xlane.f32.xlu0 %v426
  %v428 = vpop.xlane.xlu0 %427
  %vm429 = vcmp.eq.f32.partialorder %v426, %v428
  %v430 = vsel %vm429, %v425, inf
  %431 = vmin.xlane.f32.xlu0 %v430
  %v432 = vpop.xlane.xlu0 %431
  %v433 = vcvt.f32.s32 %v432
  %v434 = vcvt.f32.s32 %v428
  %v435 = vshll.u32 %v434, 16
  %v436 = vadd.s32 %v435, %v433
  %vm437 = vcmp.eq.s32.totalorder %v180, %v436
  %v438 = vsel %vm437, 1, 0
  %v439 = vcvt.s32.f32 %v438
  %v441 = vsel %vm201, %v439, 0
  %v444 = vsel %vm59, %v354, 0
  %446 = vmatprep.subr.mxu0 0.0
  %447 = vmatpush1.msra.mxu0 0.0
  %448 = vmatprep.subr.mxu0 0.0
  %449 = vmatpush1.msra.mxu0 0.0
  %450 = vmatprep.subr.mxu0 0.0
  %451 = vmatpush1.msra.mxu0 0.0
  %452 = vmatprep.subr.mxu0 0.0
  %453 = vmatpush1.msra.mxu0 0.0
  %454 = vmatprep.subr.mxu0 0.0
  %455 = vmatpush1.msra.mxu0 0.0
  %456 = vmatprep.subr.mxu0 0.0
  %457 = vmatpush1.msra.mxu0 0.0
  %458 = vmatprep.subr.mxu0 0.0
  %459 = vmatpush1.msra.mxu0 0.0
  %460 = vmatprep.subr.mxu0 0.0
  %461 = vmatpush1.msra.mxu0 0.0
  %462 = vmatprep.subr.mxu0 0.0
  %463 = vmatpush1.msra.mxu0 0.0
  %464 = vmatprep.subr.mxu0 0.0
  %465 = vmatpush1.msra.mxu0 0.0
  %466 = vmatprep.subr.mxu0 0.0
  %467 = vmatpush1.msra.mxu0 0.0
  %468 = vmatprep.subr.mxu0 0.0
  %469 = vmatpush1.msra.mxu0 0.0
  %470 = vmatprep.subr.mxu0 0.0
  %471 = vmatpush1.msra.mxu0 0.0
  %472 = vmatprep.subr.mxu0 0.0
  %473 = vmatpush1.msra.mxu0 0.0
  %474 = vmatprep.subr.mxu0 0.0
  %475 = vmatpush1.msra.mxu0 %v444
  %476 = vmatprep.subr.mxu0 0.0
  %477 = vmatpush1.msra.mxu0 %v353
  %478 = vmatprep.subr.mxu0 0.0
  %479 = vmatpush2.msra.mxu0 0.0
  %480 = vmatprep.subr.mxu0 0.0
  %481 = vmatpush2.msra.mxu0 0.0
  %482 = vmatprep.subr.mxu0 0.0
  %483 = vmatpush2.msra.mxu0 0.0
  %484 = vmatprep.subr.mxu0 0.0
  %485 = vmatpush2.msra.mxu0 0.0
  %486 = vmatprep.subr.mxu0 0.0
  %487 = vmatpush2.msra.mxu0 0.0
  %488 = vmatprep.subr.mxu0 0.0
  %489 = vmatpush2.msra.mxu0 0.0
  %490 = vmatprep.subr.mxu0 0.0
  %491 = vmatpush2.msra.mxu0 0.0
  %492 = vmatprep.subr.mxu0 0.0
  %493 = vmatpush2.msra.mxu0 0.0
  %494 = vmatprep.subr.mxu0 0.0
  %495 = vmatpush2.msra.mxu0 0.0
  %496 = vmatprep.subr.mxu0 0.0
  %497 = vmatpush2.msra.mxu0 0.0
  %498 = vmatprep.subr.mxu0 0.0
  %499 = vmatpush2.msra.mxu0 0.0
  %500 = vmatprep.subr.mxu0 0.0
  %501 = vmatpush2.msra.mxu0 0.0
  %502 = vmatprep.subr.mxu0 0.0
  %503 = vmatpush2.msra.mxu0 0.0
  %504 = vmatprep.subr.mxu0 0.0
  %505 = vmatpush2.msra.mxu0 0.0
  %506 = vmatprep.subr.mxu0 0.0
  %507 = vmatpush2.msra.mxu0 0.0
  %508 = vmatprep.subr.mxu0 0.0
  %509 = vmatpush2.msra.mxu0 0.0
  %510 = vmatprep.mubr.f32.mxu0 0.0
  %511 = vmatmul.mubr.f32.gmra.mxu0 %v441
  %v512 = vpop.f32.mrf.mxu0
  %v513 = vadd.f32 0.0, %v512
  %v514 = vpop.f32.mrf.mxu0
  %515 = vdwg.mxu0
  %v516 = vsub.f32 %v371, %v513
  %vm517 = vcmp.ge.f32.partialorder %v516, 0.0
  %v518 = vsel %vm517, 1.0, -1.0
  %v519 = vmul.f32 %v518, 0.001
  %v520 = vmul.f32 %v519, %v286
  %v521 = vsub.f32 %v66, %v520
  %v522 = vsub.f32 %v83, %v520
  %v523 = vsub.f32 %v100, %v520
  %525 = vset.pattern.permute.xlu0 0
  %526 = vperm.xlu0 %525, %v521
  %v527 = vpop.permute.xlu0 %526
  %v529 = vmul.f32 %v527, %v358
  %531 = vset.pattern.permute.xlu0 1
  %532 = vperm.xlu0 %531, %v522
  %v533 = vpop.permute.xlu0 %532
  %v535 = vmul.f32 %v533, %v363
  %v536 = vadd.f32 %v529, %v535
  %538 = vset.pattern.permute.xlu0 2
  %539 = vperm.xlu0 %538, %v523
  %v540 = vpop.permute.xlu0 %539
  %v542 = vmul.f32 %v540, %v369
  %v543 = vadd.f32 %v536, %v542
  %v544 = vmul.f32 %v543, %v521
  %v545 = vmul.f32 %v543, %v522
  %547 = vrot.lane.b32.xlu0 %v545, 127
  %v548 = vpop.permute.xlu0 %547
  %v550 = vadd.f32 %v544, %v548
  %v551 = vmul.f32 %v543, %v523
  %553 = vrot.lane.b32.xlu0 %v551, 126
  %v554 = vpop.permute.xlu0 %553
  %v556 = vadd.f32 %v550, %v554
  %v557 = vmul.f32 %v527, %v388
  %v558 = vmul.f32 %v533, %v393
  %v559 = vadd.f32 %v557, %v558
  %v560 = vmul.f32 %v540, %v399
  %v561 = vadd.f32 %v559, %v560
  %v562 = vmul.f32 %v556, 0.5
  %564 = vset.pattern.permute.xlu0 0
  %565 = vperm.xlu0 %564, %v562
  %v566 = vpop.permute.xlu0 %565
  %v568 = vsub.f32 %v566, %v561
  %v569 = vadd.f32 %v568, %v413
  %v570 = vmul.f32 %v569, -0.5
  %v571 = vsel %vm175, %v570, -inf
  %572 = vmax.xlane.f32.xlu0 %v571
  %v573 = vpop.xlane.xlu0 %572
  %v574 = vmul.f32 %v573, %v346
  %576 = vrot.lane.b32.xlu0 %v574, 127
  %v577 = vpop.permute.xlu0 %576
  %v579 = vadd.f32 %v349, %v577
  %v580 = vxor.u32 %v579, 2147483648
  %v581 = vmul.f32 %v580, 1.442695
  %v582 = vpow.pop %v581
  %v583 = vadd.f32 %v582, 1.0
  %v584 = vrcp.pop %v583
  %v585 = vmul.f32 1.0, %v584
  %vm586 = vcmask 1024
  %587 = vst.msk [vmem:[%s12] sm:$0x3] %vm586, %v585
  // Predicated region
  $region50: #{tpu_custom_call.1} parent=0 // pred_check
    _
  $region51: #{tpu_custom_call.1} parent=0 // pred_check_branch
    %589 = sbr.rel (0) target = $region53
  $region52: #{tpu_custom_call.1} parent=0 // pred_region
    _
  $region53: #{tpu_custom_call.1} parent=0 // pred_fallthru
    _
  // Predicated region
  $region54: #{tpu_custom_call.1} parent=0 // pred_check
    _
  $region55: #{tpu_custom_call.1} parent=0 // pred_check_branch
    %591 = sbr.rel (0) target = $region57
  $region56: #{tpu_custom_call.1} parent=0 // pred_region
    _
  $region57: #{tpu_custom_call.1} parent=0 // pred_fallthru
    _

</llo_original>
